<compile_context>
chip_gen: v5e
topology: v5e:2x2
jax: 0.10.0
libtpu: 0.0.40
codegen_flags: <defaults>
</compile_context>

<pallas_src>
import functools

import jax
import jax.numpy as jnp
from jax import lax
from jax.experimental import pallas as pl
from jax.experimental.pallas import tpu as pltpu

HIDDEN = 64
NEG_SLOPE = 0.01


def coder_kernel(xT_ref, w1_ref, b1_ref, w2_ref, b2_ref, oT_ref, *, precision):
    """Fused 2-layer MLP on a transposed (feature-major) activation tile.

    xT_ref : (D_in, tb)    batch on the lane/N axis -> 128-lane dense loads
    w1_ref : (H, D_in)     native nn.Linear layout, no transpose needed
    b1_ref : (H, 1)
    w2_ref : (D_out, H)
    b2_ref : (D_out, 1)
    oT_ref : (D_out, tb)   lane-dense, unmasked stores
    """
    # h_T = W1 @ x_T : (H, D_in) x (D_in, tb) -> (H, tb)
    hT = lax.dot_general(
        w1_ref[...], xT_ref[...],
        dimension_numbers=(((1,), (0,)), ((), ())),
        preferred_element_type=jnp.float32,
        precision=precision,
    )
    hT = hT + b1_ref[...]                      # (H, tb) + (H, 1) broadcast
    hT = jnp.maximum(hT, NEG_SLOPE * hT)       # LeakyReLU(0.01), single VPU max
    # out_T = W2 @ h_T : (D_out, H) x (H, tb) -> (D_out, tb)
    oT = lax.dot_general(
        w2_ref[...], hT,
        dimension_numbers=(((1,), (0,)), ((), ())),
        preferred_element_type=jnp.float32,
        precision=precision,
    )
    oT_ref[...] = (oT + b2_ref[...]).astype(oT_ref.dtype)


@functools.lru_cache(maxsize=None)
def _dot_precision():
    """Prefer Precision.HIGH (3-pass bf16, ~f32-mantissa accurate): half the MXU
    pushes of HIGHEST.  Not every Mosaic version lowers HIGH, so probe once
    (AOT compile of a tiny kernel, no execution) and fall back to HIGHEST."""
    def _probe_kernel(a_ref, b_ref, o_ref):
        o_ref[...] = lax.dot_general(
            a_ref[...], b_ref[...],
            dimension_numbers=(((1,), (0,)), ((), ())),
            preferred_element_type=jnp.float32,
            precision=lax.Precision.HIGH)

    probe = pl.pallas_call(
        _probe_kernel, out_shape=jax.ShapeDtypeStruct((8, 128), jnp.float32))
    try:
        jax.jit(probe).lower(
            jax.ShapeDtypeStruct((8, 128), jnp.float32),
            jax.ShapeDtypeStruct((128, 128), jnp.float32),
        ).compile()
        return lax.Precision.HIGH
    except Exception:  # lowering/compile rejected HIGH -> strict f32 fallback
        return lax.Precision.HIGHEST


def _cost_estimate(B, D_in, H, D_out):
    flops = 2 * B * (D_in * H + H * D_out)
    bytes_accessed = 4 * (B * D_in + H * D_in + H + D_out * H + D_out + B * D_out)
    return pl.CostEstimate(flops=flops, transcendentals=0,
                           bytes_accessed=bytes_accessed)


def coder_forward_t(x_t, w1, b1, w2, b2, *, batch_tile=4096, min_grid_steps=8):
    """Transposed-layout entry point: x_t (D_in, B) -> (D_out, B).

    Layout-aware callers should use this directly (batch on the last axis) so
    no wrapper transposes are needed at all.
    """
    D_in, B = x_t.shape
    H = w1.shape[0]
    D_out = w2.shape[0]

    b1_col = b1.reshape(H, 1)
    b2_col = b2.reshape(D_out, 1)
    ce = _cost_estimate(B, D_in, H, D_out)
    kernel = functools.partial(coder_kernel, precision=_dot_precision())

    # Keep the lane axis of every block a multiple of 128 (unmasked stores).
    tb = max(128, (int(batch_tile) // 128) * 128)
    n_steps = pl.cdiv(B, tb)

    if n_steps >= min_grid_steps:
        # Batched path: tile over B only; cdiv grid handles a non-divisible tail
        # block via masked edge stores.  Weights/biases stay VMEM-resident with
        # constant index_maps; the single grid axis is "parallel" so v7x's two
        # TensorCores split it.  Per-step traffic at tb=4096 is ~0.75 MiB
        # (x-block 512 KiB + out-block 256 KiB) double-buffered -- far inside
        # v5e's 16 MiB scoped VMEM and v7x's 64 MiB part.
        return pl.pallas_call(
            kernel,
            out_shape=jax.ShapeDtypeStruct((D_out, B), x_t.dtype),
            grid=(n_steps,),
            in_specs=[
                pl.BlockSpec((D_in, tb), lambda i: (0, i)),
                pl.BlockSpec((H, D_in), lambda i: (0, 0)),
                pl.BlockSpec((H, 1), lambda i: (0, 0)),
                pl.BlockSpec((D_out, H), lambda i: (0, 0)),
                pl.BlockSpec((D_out, 1), lambda i: (0, 0)),
            ],
            out_specs=pl.BlockSpec((D_out, tb), lambda i: (0, i)),
            compiler_params=pltpu.CompilerParams(
                dimension_semantics=("parallel",),
                vmem_limit_bytes=32 * 1024 * 1024,
            ),
            cost_estimate=ce,
        )(x_t, w1, b1_col, w2, b2_col)

    # Small/medium-B path: the whole problem is one block; no grid, no per-step
    # pipelining overhead, every operand/output whole-array resident in VMEM.
    vmem = pl.BlockSpec(memory_space=pltpu.MemorySpace.VMEM)
    return pl.pallas_call(
        kernel,
        out_shape=jax.ShapeDtypeStruct((D_out, B), x_t.dtype),
        in_specs=[vmem] * 5,
        out_specs=vmem,
        cost_estimate=ce,
    )(x_t, w1, b1_col, w2, b2_col)


def coder_forward(x, w1, b1, w2, b2, *, batch_tile=4096):
    """Drop-in equivalent of Coder.forward: x (..., D_in) -> (..., D_out).

    Internally runs the kernel on the transposed (feature-major) layout; the two
    wrapper-side transposes are plain XLA layout ops and disappear entirely if
    the caller keeps activations feature-major and calls `coder_forward_t`.
    """
    D_in = x.shape[-1]
    lead = x.shape[:-1]
    x2d = x.reshape(-1, D_in)
    out_t = coder_forward_t(x2d.T, w1, b1, w2, b2, batch_tile=batch_tile)
    return out_t.T.reshape(*lead, w2.shape[0])


def _reference(x, w1, b1, w2, b2):
    h = jnp.dot(x, w1.T, precision=lax.Precision.HIGHEST) + b1
    h = jnp.where(h > 0, h, NEG_SLOPE * h)
    return jnp.dot(h, w2.T, precision=lax.Precision.HIGHEST) + b2


if __name__ == "__main__":
    # Shapes consistent with the module: Coder(input_shape=32, output_shape=16)
    B, D_in, H, D_out = 8, 32, HIDDEN, 16

    key = jax.random.PRNGKey(0)
    kx, kw1, kb1, kw2, kb2, kxb = jax.random.split(key, 6)

    x = jax.random.normal(kx, (B, D_in), dtype=jnp.float32)

    # reset_parameters(): weights ~ N(0, 0.1); biases keep the nn.Linear default
    # U(-1/sqrt(fan_in), 1/sqrt(fan_in)) init.
    w1 = 0.1 * jax.random.normal(kw1, (H, D_in), dtype=jnp.float32)
    b1 = jax.random.uniform(kb1, (H,), dtype=jnp.float32,
                            minval=-1.0 / jnp.sqrt(D_in), maxval=1.0 / jnp.sqrt(D_in))
    w2 = 0.1 * jax.random.normal(kw2, (D_out, H), dtype=jnp.float32)
    b2 = jax.random.uniform(kb2, (D_out,), dtype=jnp.float32,
                            minval=-1.0 / jnp.sqrt(H), maxval=1.0 / jnp.sqrt(H))

    # Tolerances: the kernel may run at Precision.HIGH (3-pass bf16, ~f32
    # mantissa); 1e-4 is well above its error (~1e-5 abs here) and far below any
    # real bug (orientation/bias/activation mistakes give >= 1e-2).
    tol = dict(atol=1e-4, rtol=1e-4)

    # --- small-B (no-grid, whole-in-VMEM) path ---
    out = jax.block_until_ready(coder_forward(x, w1, b1, w2, b2))
    ref = _reference(x, w1, b1, w2, b2)
    assert out.shape == (B, D_out)
    assert jnp.allclose(out, ref, **tol)

    # --- batched (tiled, "parallel" grid) path; non-divisible B exercises the
    #     masked tail block of the cdiv grid ---
    Bb = 8 * 1024 + 37
    xb = jax.random.normal(kxb, (Bb, D_in), dtype=jnp.float32)
    out_b = jax.block_until_ready(coder_forward(xb, w1, b1, w2, b2, batch_tile=1024))
    ref_b = _reference(xb, w1, b1, w2, b2)
    assert out_b.shape == (Bb, D_out)
    assert jnp.allclose(out_b, ref_b, **tol)

    print("KERNEL_OK")
</pallas_src>

<mosaic_0001>
module attributes {stable_mosaic.version = 11 : i64} {
  func.func @coder_kernel(%arg0: memref<32x8xf32, #tpu.memory_space<vmem>>, %arg1: memref<64x32xf32, #tpu.memory_space<vmem>>, %arg2: memref<64x1xf32, #tpu.memory_space<vmem>>, %arg3: memref<16x64xf32, #tpu.memory_space<vmem>>, %arg4: memref<16x1xf32, #tpu.memory_space<vmem>>, %arg5: memref<16x8xf32, #tpu.memory_space<vmem>>) attributes {dimension_semantics = [], scalar_prefetch = 0 : i64, scratch_operands = 0 : i64, tpu.core_type = #tpu.core_type<tc>} {
    %c0 = arith.constant 0 : index
    %c0_0 = arith.constant 0 : index
    %0 = vector.load %arg1[%c0, %c0_0] : memref<64x32xf32, #tpu.memory_space<vmem>>, vector<64x32xf32>
    %c0_1 = arith.constant 0 : index
    %c0_2 = arith.constant 0 : index
    %1 = vector.load %arg0[%c0_1, %c0_2] : memref<32x8xf32, #tpu.memory_space<vmem>>, vector<32x8xf32>
    %cst = arith.constant dense<0.000000e+00> : vector<64x8xf32>
    %2 = tpu.matmul %0, %1, %cst {dimension_numbers = #tpu.dot_dimension_numbers<[1], [0], [0], [1], [0, 0, 1, 1], [], []>, precision = #tpu.contract_precision<fp32>} : vector<64x32xf32>, vector<32x8xf32>, vector<64x8xf32> -> vector<64x8xf32>
    %c0_3 = arith.constant 0 : index
    %c0_4 = arith.constant 0 : index
    %3 = vector.load %arg2[%c0_3, %c0_4] : memref<64x1xf32, #tpu.memory_space<vmem>>, vector<64x1xf32>
    %4 = vector.broadcast %3 : vector<64x1xf32> to vector<64x8xf32>
    %5 = arith.addf %2, %4 : vector<64x8xf32>
    %cst_5 = arith.constant 0.00999999977 : f32
    %6 = vector.broadcast %cst_5 : f32 to vector<64x8xf32>
    %7 = arith.mulf %6, %5 : vector<64x8xf32>
    %8 = arith.maximumf %5, %7 : vector<64x8xf32>
    %c0_6 = arith.constant 0 : index
    %c0_7 = arith.constant 0 : index
    %9 = vector.load %arg3[%c0_6, %c0_7] : memref<16x64xf32, #tpu.memory_space<vmem>>, vector<16x64xf32>
    %cst_8 = arith.constant dense<0.000000e+00> : vector<16x8xf32>
    %10 = tpu.matmul %9, %8, %cst_8 {dimension_numbers = #tpu.dot_dimension_numbers<[1], [0], [0], [1], [0, 0, 1, 1], [], []>, precision = #tpu.contract_precision<fp32>} : vector<16x64xf32>, vector<64x8xf32>, vector<16x8xf32> -> vector<16x8xf32>
    %c0_9 = arith.constant 0 : index
    %c0_10 = arith.constant 0 : index
    %11 = vector.load %arg4[%c0_9, %c0_10] : memref<16x1xf32, #tpu.memory_space<vmem>>, vector<16x1xf32>
    %12 = vector.broadcast %11 : vector<16x1xf32> to vector<16x8xf32>
    %13 = arith.addf %10, %12 : vector<16x8xf32>
    %c0_11 = arith.constant 0 : index
    %c0_12 = arith.constant 0 : index
    %14 = vector.load %arg5[%c0_11, %c0_12] : memref<16x8xf32, #tpu.memory_space<vmem>>, vector<16x8xf32>
    tpu.vector_store %arg5[%c0_11, %c0_12], %13 {strides = array<i32>} : memref<16x8xf32, #tpu.memory_space<vmem>>, vector<16x8xf32>,
    return
  }
}

</mosaic_0001>

<llo_original>
// kernel: tpu_custom_call.1
$region0: #{tpu_custom_call.1}
  #allocation0 [shape = 'u32[]', space=smem, size = 0x4, offset = 0x4, fixed_abs, tag = 'smem constant byte address 0x4 - core index']
  #allocation1 [shape = 'u32[72,128]{1,0:T(1,128)}', space=vmem, size = 0x9000, scoped, tag = 'internal scratch']
  %s0 = inlined_call_operand.vmem [shape: f32[32,8], index: 0, kind: input, shape index: {}]
  %s1 = inlined_call_operand.vmem [shape: f32[64,32], index: 1, kind: input, shape index: {}]
  %s2 = inlined_call_operand.vmem [shape: f32[64,1], index: 2, kind: input, shape index: {}]
  %s3 = inlined_call_operand.vmem [shape: f32[16,64], index: 3, kind: input, shape index: {}]
  %s4 = inlined_call_operand.vmem [shape: f32[16,1], index: 4, kind: input, shape index: {}]
  %s5 = inlined_call_operand.vmem [shape: f32[16,8], index: 5, kind: output, shape index: {}]
  %s6 = sld [smem:[#allocation0]]
  $region30: #{tpu_custom_call.1} parent=0
    _
  %s8 = ssub.s32 1, %s6
  %s9 = scalar_select 0, %s8, %s6
  // Predicated region
  $region2: #{tpu_custom_call.1} parent=0 // pred_check
    _
  $region3: #{tpu_custom_call.1} parent=0 // pred_check_branch
    %11 = sbr.rel (0) target = $region5
  $region4: #{tpu_custom_call.1} parent=0 // pred_region
    _
  $region5: #{tpu_custom_call.1} parent=0 // pred_fallthru
    _
  // Predicated region
  $region6: #{tpu_custom_call.1} parent=0 // pred_check
    _
  $region7: #{tpu_custom_call.1} parent=0 // pred_check_branch
    %13 = sbr.rel (0) target = $region9
  $region8: #{tpu_custom_call.1} parent=0 // pred_region
    _
  $region9: #{tpu_custom_call.1} parent=0 // pred_fallthru
    _
  // Predicated region
  $region10: #{tpu_custom_call.1} parent=0 // pred_check
    _
  $region11: #{tpu_custom_call.1} parent=0 // pred_check_branch
    %15 = sbr.rel (0) target = $region13
  $region12: #{tpu_custom_call.1} parent=0 // pred_region
    _
  $region13: #{tpu_custom_call.1} parent=0 // pred_fallthru
    _
  // Predicated region
  $region14: #{tpu_custom_call.1} parent=0 // pred_check
    _
  $region15: #{tpu_custom_call.1} parent=0 // pred_check_branch
    %17 = sbr.rel (0) target = $region17
  $region16: #{tpu_custom_call.1} parent=0 // pred_region
    _
  $region17: #{tpu_custom_call.1} parent=0 // pred_fallthru
    _
  // Predicated region
  $region18: #{tpu_custom_call.1} parent=0 // pred_check
    _
  $region19: #{tpu_custom_call.1} parent=0 // pred_check_branch
    %19 = sbr.rel (0) target = $region21
  $region20: #{tpu_custom_call.1} parent=0 // pred_region
    _
  $region21: #{tpu_custom_call.1} parent=0 // pred_fallthru
    _
  %v20 = vld [vmem:[%s1] sm:$0xff]
  %v21 = vld [vmem:[%s1 + $0x8] sm:$0xff]
  %v22 = vld [vmem:[%s1 + $0x10] sm:$0xff]
  %v23 = vld [vmem:[%s1 + $0x18] sm:$0xff]
  %v24 = vld [vmem:[%s1 + $0x20] sm:$0xff]
  %v25 = vld [vmem:[%s1 + $0x28] sm:$0xff]
  %v26 = vld [vmem:[%s1 + $0x30] sm:$0xff]
  %v27 = vld [vmem:[%s1 + $0x38] sm:$0xff]
  %v28 = vld [vmem:[%s0] sm:$0xff]
  %v29 = vld [vmem:[%s0 + $0x8] sm:$0xff]
  %v30 = vld [vmem:[%s0 + $0x10] sm:$0xff]
  %v31 = vld [vmem:[%s0 + $0x18] sm:$0xff]
  %v32 = vld [vmem:[%s2] sm:$0xff]
  %v33 = vld [vmem:[%s2 + $0x8] sm:$0xff]
  %v34 = vld [vmem:[%s2 + $0x10] sm:$0xff]
  %v35 = vld [vmem:[%s2 + $0x18] sm:$0xff]
  %v36 = vld [vmem:[%s2 + $0x20] sm:$0xff]
  %v37 = vld [vmem:[%s2 + $0x28] sm:$0xff]
  %v38 = vld [vmem:[%s2 + $0x30] sm:$0xff]
  %v39 = vld [vmem:[%s2 + $0x38] sm:$0xff]
  %41 = vset.pattern.permute.xlu0 0
  %42 = vperm.xlu0 %41, %v32
  %v43 = vpop.permute.xlu0 %42
  %46 = vset.pattern.permute.xlu0 0
  %47 = vperm.xlu0 %46, %v33
  %v48 = vpop.permute.xlu0 %47
  %51 = vset.pattern.permute.xlu0 0
  %52 = vperm.xlu0 %51, %v34
  %v53 = vpop.permute.xlu0 %52
  %56 = vset.pattern.permute.xlu0 0
  %57 = vperm.xlu0 %56, %v35
  %v58 = vpop.permute.xlu0 %57
  %61 = vset.pattern.permute.xlu0 0
  %62 = vperm.xlu0 %61, %v36
  %v63 = vpop.permute.xlu0 %62
  %66 = vset.pattern.permute.xlu0 0
  %67 = vperm.xlu0 %66, %v37
  %v68 = vpop.permute.xlu0 %67
  %71 = vset.pattern.permute.xlu0 0
  %72 = vperm.xlu0 %71, %v38
  %v73 = vpop.permute.xlu0 %72
  %76 = vset.pattern.permute.xlu0 0
  %77 = vperm.xlu0 %76, %v39
  %v78 = vpop.permute.xlu0 %77
  %vm80 = vcmask 261120
  %v82 = vsel %vm80, %v20, 0
  %v85 = vsel %vm80, %v21, 0
  %v88 = vsel %vm80, %v22, 0
  %v91 = vsel %vm80, %v23, 0
  %v94 = vsel %vm80, %v24, 0
  %v97 = vsel %vm80, %v25, 0
  %v100 = vsel %vm80, %v26, 0
  %v103 = vsel %vm80, %v27, 0
  %105 = vmatpush.msra.mxu0 0.0
  %106 = vmatpush.msra.mxu0 0.0
  %107 = vmatpush.msra.mxu0 0.0
  %108 = vmatpush.msra.mxu0 0.0
  %109 = vmatpush.msra.mxu0 0.0
  %110 = vmatpush.msra.mxu0 0.0
  %111 = vmatpush.msra.mxu0 0.0
  %112 = vmatpush.msra.mxu0 0.0
  %113 = vmatpush.msra.mxu0 0.0
  %114 = vmatpush.msra.mxu0 0.0
  %115 = vmatpush.msra.mxu0 0.0
  %116 = vmatpush.msra.mxu0 0.0
  %v117 = vand.u32 %v31, 4294901760
  %118 = vmatpush.msra.mxu0 %v117
  %v119 = vand.u32 %v30, 4294901760
  %120 = vmatpush.msra.mxu0 %v119
  %v121 = vand.u32 %v29, 4294901760
  %122 = vmatpush.msra.mxu0 %v121
  %v123 = vand.u32 %v28, 4294901760
  %124 = vmatpush.msra.mxu0 %v123
  %v125 = vand.u32 %v82, 4294901760
  %v126 = vsub.f32 %v82, %v125
  %v127 = vand.u32 %v126, 4294901760
  %v128 = vsub.f32 %v126, %v127
  %v129 = vand.u32 %v128, 4294901760
  %130 = vmatmul.f32.gmra.mxu0 %v129
  %v131 = vpop.f32.mrf.mxu0
  %v132 = vadd.f32 %v43, %v131
  %v133 = vand.u32 %v85, 4294901760
  %v134 = vsub.f32 %v85, %v133
  %v135 = vand.u32 %v134, 4294901760
  %v136 = vsub.f32 %v134, %v135
  %v137 = vand.u32 %v136, 4294901760
  %138 = vmatmul.f32.gmra.mxu0 %v137
  %v139 = vpop.f32.mrf.mxu0
  %v140 = vadd.f32 %v48, %v139
  %v141 = vand.u32 %v88, 4294901760
  %v142 = vsub.f32 %v88, %v141
  %v143 = vand.u32 %v142, 4294901760
  %v144 = vsub.f32 %v142, %v143
  %v145 = vand.u32 %v144, 4294901760
  %146 = vmatmul.f32.gmra.mxu0 %v145
  %v147 = vpop.f32.mrf.mxu0
  %v148 = vadd.f32 %v53, %v147
  %v149 = vand.u32 %v91, 4294901760
  %v150 = vsub.f32 %v91, %v149
  %v151 = vand.u32 %v150, 4294901760
  %v152 = vsub.f32 %v150, %v151
  %v153 = vand.u32 %v152, 4294901760
  %154 = vmatmul.f32.gmra.mxu0 %v153
  %v155 = vpop.f32.mrf.mxu0
  %v156 = vadd.f32 %v58, %v155
  %v157 = vand.u32 %v94, 4294901760
  %v158 = vsub.f32 %v94, %v157
  %v159 = vand.u32 %v158, 4294901760
  %v160 = vsub.f32 %v158, %v159
  %v161 = vand.u32 %v160, 4294901760
  %162 = vmatmul.f32.gmra.mxu0 %v161
  %v163 = vpop.f32.mrf.mxu0
  %v164 = vadd.f32 %v63, %v163
  %v165 = vand.u32 %v97, 4294901760
  %v166 = vsub.f32 %v97, %v165
  %v167 = vand.u32 %v166, 4294901760
  %v168 = vsub.f32 %v166, %v167
  %v169 = vand.u32 %v168, 4294901760
  %170 = vmatmul.f32.gmra.mxu0 %v169
  %v171 = vpop.f32.mrf.mxu0
  %v172 = vadd.f32 %v68, %v171
  %v173 = vand.u32 %v100, 4294901760
  %v174 = vsub.f32 %v100, %v173
  %v175 = vand.u32 %v174, 4294901760
  %v176 = vsub.f32 %v174, %v175
  %v177 = vand.u32 %v176, 4294901760
  %178 = vmatmul.f32.gmra.mxu0 %v177
  %v179 = vpop.f32.mrf.mxu0
  %v180 = vadd.f32 %v73, %v179
  %v181 = vand.u32 %v103, 4294901760
  %v182 = vsub.f32 %v103, %v181
  %v183 = vand.u32 %v182, 4294901760
  %v184 = vsub.f32 %v182, %v183
  %v185 = vand.u32 %v184, 4294901760
  %186 = vmatmul.f32.gmra.mxu0 %v185
  %v187 = vpop.f32.mrf.mxu0
  %v188 = vadd.f32 %v78, %v187
  %189 = vdwg.mxu0
  %190 = vmatpush.msra.mxu0 0.0
  %191 = vmatpush.msra.mxu0 0.0
  %192 = vmatpush.msra.mxu0 0.0
  %193 = vmatpush.msra.mxu0 0.0
  %194 = vmatpush.msra.mxu0 0.0
  %195 = vmatpush.msra.mxu0 0.0
  %196 = vmatpush.msra.mxu0 0.0
  %197 = vmatpush.msra.mxu0 0.0
  %198 = vmatpush.msra.mxu0 0.0
  %199 = vmatpush.msra.mxu0 0.0
  %200 = vmatpush.msra.mxu0 0.0
  %201 = vmatpush.msra.mxu0 0.0
  %v202 = vand.u32 %v31, 4294901760
  %v203 = vsub.f32 %v31, %v202
  %v204 = vand.u32 %v203, 4294901760
  %v205 = vsub.f32 %v203, %v204
  %v206 = vand.u32 %v205, 4294901760
  %207 = vmatpush.msra.mxu0 %v206
  %v208 = vand.u32 %v30, 4294901760
  %v209 = vsub.f32 %v30, %v208
  %v210 = vand.u32 %v209, 4294901760
  %v211 = vsub.f32 %v209, %v210
  %v212 = vand.u32 %v211, 4294901760
  %213 = vmatpush.msra.mxu0 %v212
  %v214 = vand.u32 %v29, 4294901760
  %v215 = vsub.f32 %v29, %v214
  %v216 = vand.u32 %v215, 4294901760
  %v217 = vsub.f32 %v215, %v216
  %v218 = vand.u32 %v217, 4294901760
  %219 = vmatpush.msra.mxu0 %v218
  %v220 = vand.u32 %v28, 4294901760
  %v221 = vsub.f32 %v28, %v220
  %v222 = vand.u32 %v221, 4294901760
  %v223 = vsub.f32 %v221, %v222
  %v224 = vand.u32 %v223, 4294901760
  %225 = vmatpush.msra.mxu0 %v224
  %v226 = vand.u32 %v82, 4294901760
  %227 = vmatmul.f32.gmra.mxu0 %v226
  %v228 = vpop.f32.mrf.mxu0
  %v229 = vadd.f32 %v132, %v228
  %v230 = vand.u32 %v85, 4294901760
  %231 = vmatmul.f32.gmra.mxu0 %v230
  %v232 = vpop.f32.mrf.mxu0
  %v233 = vadd.f32 %v140, %v232
  %v234 = vand.u32 %v88, 4294901760
  %235 = vmatmul.f32.gmra.mxu0 %v234
  %v236 = vpop.f32.mrf.mxu0
  %v237 = vadd.f32 %v148, %v236
  %v238 = vand.u32 %v91, 4294901760
  %239 = vmatmul.f32.gmra.mxu0 %v238
  %v240 = vpop.f32.mrf.mxu0
  %v241 = vadd.f32 %v156, %v240
  %v242 = vand.u32 %v94, 4294901760
  %243 = vmatmul.f32.gmra.mxu0 %v242
  %v244 = vpop.f32.mrf.mxu0
  %v245 = vadd.f32 %v164, %v244
  %v246 = vand.u32 %v97, 4294901760
  %247 = vmatmul.f32.gmra.mxu0 %v246
  %v248 = vpop.f32.mrf.mxu0
  %v249 = vadd.f32 %v172, %v248
  %v250 = vand.u32 %v100, 4294901760
  %251 = vmatmul.f32.gmra.mxu0 %v250
  %v252 = vpop.f32.mrf.mxu0
  %v253 = vadd.f32 %v180, %v252
  %v254 = vand.u32 %v103, 4294901760
  %255 = vmatmul.f32.gmra.mxu0 %v254
  %v256 = vpop.f32.mrf.mxu0
  %v257 = vadd.f32 %v188, %v256
  %258 = vdwg.mxu0
  %259 = vmatpush.msra.mxu0 0.0
  %260 = vmatpush.msra.mxu0 0.0
  %261 = vmatpush.msra.mxu0 0.0
  %262 = vmatpush.msra.mxu0 0.0
  %263 = vmatpush.msra.mxu0 0.0
  %264 = vmatpush.msra.mxu0 0.0
  %265 = vmatpush.msra.mxu0 0.0
  %266 = vmatpush.msra.mxu0 0.0
  %267 = vmatpush.msra.mxu0 0.0
  %268 = vmatpush.msra.mxu0 0.0
  %269 = vmatpush.msra.mxu0 0.0
  %270 = vmatpush.msra.mxu0 0.0
  %v271 = vand.u32 %v31, 4294901760
  %v272 = vsub.f32 %v31, %v271
  %273 = vmatpush.msra.mxu0 %v272
  %v274 = vand.u32 %v30, 4294901760
  %v275 = vsub.f32 %v30, %v274
  %276 = vmatpush.msra.mxu0 %v275
  %v277 = vand.u32 %v29, 4294901760
  %v278 = vsub.f32 %v29, %v277
  %279 = vmatpush.msra.mxu0 %v278
  %v280 = vand.u32 %v28, 4294901760
  %v281 = vsub.f32 %v28, %v280
  %282 = vmatpush.msra.mxu0 %v281
  %v283 = vand.u32 %v82, 4294901760
  %v284 = vsub.f32 %v82, %v283
  %285 = vmatmul.f32.gmra.mxu0 %v284
  %v286 = vpop.f32.mrf.mxu0
  %v287 = vadd.f32 %v229, %v286
  %v288 = vand.u32 %v85, 4294901760
  %v289 = vsub.f32 %v85, %v288
  %290 = vmatmul.f32.gmra.mxu0 %v289
  %v291 = vpop.f32.mrf.mxu0
  %v292 = vadd.f32 %v233, %v291
  %v293 = vand.u32 %v88, 4294901760
  %v294 = vsub.f32 %v88, %v293
  %295 = vmatmul.f32.gmra.mxu0 %v294
  %v296 = vpop.f32.mrf.mxu0
  %v297 = vadd.f32 %v237, %v296
  %v298 = vand.u32 %v91, 4294901760
  %v299 = vsub.f32 %v91, %v298
  %300 = vmatmul.f32.gmra.mxu0 %v299
  %v301 = vpop.f32.mrf.mxu0
  %v302 = vadd.f32 %v241, %v301
  %v303 = vand.u32 %v94, 4294901760
  %v304 = vsub.f32 %v94, %v303
  %305 = vmatmul.f32.gmra.mxu0 %v304
  %v306 = vpop.f32.mrf.mxu0
  %v307 = vadd.f32 %v245, %v306
  %v308 = vand.u32 %v97, 4294901760
  %v309 = vsub.f32 %v97, %v308
  %310 = vmatmul.f32.gmra.mxu0 %v309
  %v311 = vpop.f32.mrf.mxu0
  %v312 = vadd.f32 %v249, %v311
  %v313 = vand.u32 %v100, 4294901760
  %v314 = vsub.f32 %v100, %v313
  %315 = vmatmul.f32.gmra.mxu0 %v314
  %v316 = vpop.f32.mrf.mxu0
  %v317 = vadd.f32 %v253, %v316
  %v318 = vand.u32 %v103, 4294901760
  %v319 = vsub.f32 %v103, %v318
  %320 = vmatmul.f32.gmra.mxu0 %v319
  %v321 = vpop.f32.mrf.mxu0
  %v322 = vadd.f32 %v257, %v321
  %323 = vdwg.mxu0
  %324 = vmatpush.msra.mxu0 0.0
  %325 = vmatpush.msra.mxu0 0.0
  %326 = vmatpush.msra.mxu0 0.0
  %327 = vmatpush.msra.mxu0 0.0
  %328 = vmatpush.msra.mxu0 0.0
  %329 = vmatpush.msra.mxu0 0.0
  %330 = vmatpush.msra.mxu0 0.0
  %331 = vmatpush.msra.mxu0 0.0
  %332 = vmatpush.msra.mxu0 0.0
  %333 = vmatpush.msra.mxu0 0.0
  %334 = vmatpush.msra.mxu0 0.0
  %335 = vmatpush.msra.mxu0 0.0
  %v336 = vand.u32 %v31, 4294901760
  %337 = vmatpush.msra.mxu0 %v336
  %v338 = vand.u32 %v30, 4294901760
  %339 = vmatpush.msra.mxu0 %v338
  %v340 = vand.u32 %v29, 4294901760
  %341 = vmatpush.msra.mxu0 %v340
  %v342 = vand.u32 %v28, 4294901760
  %343 = vmatpush.msra.mxu0 %v342
  %v344 = vand.u32 %v82, 4294901760
  %v345 = vsub.f32 %v82, %v344
  %v346 = vand.u32 %v345, 4294901760
  %347 = vmatmul.f32.gmra.mxu0 %v346
  %v348 = vpop.f32.mrf.mxu0
  %v349 = vadd.f32 %v287, %v348
  %v350 = vand.u32 %v85, 4294901760
  %v351 = vsub.f32 %v85, %v350
  %v352 = vand.u32 %v351, 4294901760
  %353 = vmatmul.f32.gmra.mxu0 %v352
  %v354 = vpop.f32.mrf.mxu0
  %v355 = vadd.f32 %v292, %v354
  %v356 = vand.u32 %v88, 4294901760
  %v357 = vsub.f32 %v88, %v356
  %v358 = vand.u32 %v357, 4294901760
  %359 = vmatmul.f32.gmra.mxu0 %v358
  %v360 = vpop.f32.mrf.mxu0
  %v361 = vadd.f32 %v297, %v360
  %v362 = vand.u32 %v91, 4294901760
  %v363 = vsub.f32 %v91, %v362
  %v364 = vand.u32 %v363, 4294901760
  %365 = vmatmul.f32.gmra.mxu0 %v364
  %v366 = vpop.f32.mrf.mxu0
  %v367 = vadd.f32 %v302, %v366
  %v368 = vand.u32 %v94, 4294901760
  %v369 = vsub.f32 %v94, %v368
  %v370 = vand.u32 %v369, 4294901760
  %371 = vmatmul.f32.gmra.mxu0 %v370
  %v372 = vpop.f32.mrf.mxu0
  %v373 = vadd.f32 %v307, %v372
  %v374 = vand.u32 %v97, 4294901760
  %v375 = vsub.f32 %v97, %v374
  %v376 = vand.u32 %v375, 4294901760
  %377 = vmatmul.f32.gmra.mxu0 %v376
  %v378 = vpop.f32.mrf.mxu0
  %v379 = vadd.f32 %v312, %v378
  %v380 = vand.u32 %v100, 4294901760
  %v381 = vsub.f32 %v100, %v380
  %v382 = vand.u32 %v381, 4294901760
  %383 = vmatmul.f32.gmra.mxu0 %v382
  %v384 = vpop.f32.mrf.mxu0
  %v385 = vadd.f32 %v317, %v384
  %v386 = vand.u32 %v103, 4294901760
  %v387 = vsub.f32 %v103, %v386
  %v388 = vand.u32 %v387, 4294901760
  %389 = vmatmul.f32.gmra.mxu0 %v388
  %v390 = vpop.f32.mrf.mxu0
  %v391 = vadd.f32 %v322, %v390
  %392 = vdwg.mxu0
  %393 = vmatpush.msra.mxu0 0.0
  %394 = vmatpush.msra.mxu0 0.0
  %395 = vmatpush.msra.mxu0 0.0
  %396 = vmatpush.msra.mxu0 0.0
  %397 = vmatpush.msra.mxu0 0.0
  %398 = vmatpush.msra.mxu0 0.0
  %399 = vmatpush.msra.mxu0 0.0
  %400 = vmatpush.msra.mxu0 0.0
  %401 = vmatpush.msra.mxu0 0.0
  %402 = vmatpush.msra.mxu0 0.0
  %403 = vmatpush.msra.mxu0 0.0
  %404 = vmatpush.msra.mxu0 0.0
  %v405 = vand.u32 %v31, 4294901760
  %v406 = vsub.f32 %v31, %v405
  %v407 = vand.u32 %v406, 4294901760
  %408 = vmatpush.msra.mxu0 %v407
  %v409 = vand.u32 %v30, 4294901760
  %v410 = vsub.f32 %v30, %v409
  %v411 = vand.u32 %v410, 4294901760
  %412 = vmatpush.msra.mxu0 %v411
  %v413 = vand.u32 %v29, 4294901760
  %v414 = vsub.f32 %v29, %v413
  %v415 = vand.u32 %v414, 4294901760
  %416 = vmatpush.msra.mxu0 %v415
  %v417 = vand.u32 %v28, 4294901760
  %v418 = vsub.f32 %v28, %v417
  %v419 = vand.u32 %v418, 4294901760
  %420 = vmatpush.msra.mxu0 %v419
  %v421 = vand.u32 %v82, 4294901760
  %422 = vmatmul.f32.gmra.mxu0 %v421
  %v423 = vpop.f32.mrf.mxu0
  %v424 = vadd.f32 %v349, %v423
  %v425 = vand.u32 %v85, 4294901760
  %426 = vmatmul.f32.gmra.mxu0 %v425
  %v427 = vpop.f32.mrf.mxu0
  %v428 = vadd.f32 %v355, %v427
  %v429 = vand.u32 %v88, 4294901760
  %430 = vmatmul.f32.gmra.mxu0 %v429
  %v431 = vpop.f32.mrf.mxu0
  %v432 = vadd.f32 %v361, %v431
  %v433 = vand.u32 %v91, 4294901760
  %434 = vmatmul.f32.gmra.mxu0 %v433
  %v435 = vpop.f32.mrf.mxu0
  %v436 = vadd.f32 %v367, %v435
  %v437 = vand.u32 %v94, 4294901760
  %438 = vmatmul.f32.gmra.mxu0 %v437
  %v439 = vpop.f32.mrf.mxu0
  %v440 = vadd.f32 %v373, %v439
  %v441 = vand.u32 %v97, 4294901760
  %442 = vmatmul.f32.gmra.mxu0 %v441
  %v443 = vpop.f32.mrf.mxu0
  %v444 = vadd.f32 %v379, %v443
  %v445 = vand.u32 %v100, 4294901760
  %446 = vmatmul.f32.gmra.mxu0 %v445
  %v447 = vpop.f32.mrf.mxu0
  %v448 = vadd.f32 %v385, %v447
  %v449 = vand.u32 %v103, 4294901760
  %450 = vmatmul.f32.gmra.mxu0 %v449
  %v451 = vpop.f32.mrf.mxu0
  %v452 = vadd.f32 %v391, %v451
  %453 = vdwg.mxu0
  %454 = vmatpush.msra.mxu0 0.0
  %455 = vmatpush.msra.mxu0 0.0
  %456 = vmatpush.msra.mxu0 0.0
  %457 = vmatpush.msra.mxu0 0.0
  %458 = vmatpush.msra.mxu0 0.0
  %459 = vmatpush.msra.mxu0 0.0
  %460 = vmatpush.msra.mxu0 0.0
  %461 = vmatpush.msra.mxu0 0.0
  %462 = vmatpush.msra.mxu0 0.0
  %463 = vmatpush.msra.mxu0 0.0
  %464 = vmatpush.msra.mxu0 0.0
  %465 = vmatpush.msra.mxu0 0.0
  %v466 = vand.u32 %v31, 4294901760
  %467 = vmatpush.msra.mxu0 %v466
  %v468 = vand.u32 %v30, 4294901760
  %469 = vmatpush.msra.mxu0 %v468
  %v470 = vand.u32 %v29, 4294901760
  %471 = vmatpush.msra.mxu0 %v470
  %v472 = vand.u32 %v28, 4294901760
  %473 = vmatpush.msra.mxu0 %v472
  %v474 = vand.u32 %v82, 4294901760
  %475 = vmatmul.f32.gmra.mxu0 %v474
  %v476 = vpop.f32.mrf.mxu0
  %v477 = vadd.f32 %v424, %v476
  %v478 = vand.u32 %v85, 4294901760
  %479 = vmatmul.f32.gmra.mxu0 %v478
  %v480 = vpop.f32.mrf.mxu0
  %v481 = vadd.f32 %v428, %v480
  %v482 = vand.u32 %v88, 4294901760
  %483 = vmatmul.f32.gmra.mxu0 %v482
  %v484 = vpop.f32.mrf.mxu0
  %v485 = vadd.f32 %v432, %v484
  %v486 = vand.u32 %v91, 4294901760
  %487 = vmatmul.f32.gmra.mxu0 %v486
  %v488 = vpop.f32.mrf.mxu0
  %v489 = vadd.f32 %v436, %v488
  %v490 = vand.u32 %v94, 4294901760
  %491 = vmatmul.f32.gmra.mxu0 %v490
  %v492 = vpop.f32.mrf.mxu0
  %v493 = vadd.f32 %v440, %v492
  %v494 = vand.u32 %v97, 4294901760
  %495 = vmatmul.f32.gmra.mxu0 %v494
  %v496 = vpop.f32.mrf.mxu0
  %v497 = vadd.f32 %v444, %v496
  %v498 = vand.u32 %v100, 4294901760
  %499 = vmatmul.f32.gmra.mxu0 %v498
  %v500 = vpop.f32.mrf.mxu0
  %v501 = vadd.f32 %v448, %v500
  %v502 = vand.u32 %v103, 4294901760
  %503 = vmatmul.f32.gmra.mxu0 %v502
  %v504 = vpop.f32.mrf.mxu0
  %v505 = vadd.f32 %v452, %v504
  %506 = vdwg.mxu0
  %v507 = vmul.f32 %v477, 0.01
  %v508 = vmul.f32 %v481, 0.01
  %v509 = vmul.f32 %v485, 0.01
  %v510 = vmul.f32 %v489, 0.01
  %v511 = vmul.f32 %v493, 0.01
  %v512 = vmul.f32 %v497, 0.01
  %v513 = vmul.f32 %v501, 0.01
  %v514 = vmul.f32 %v505, 0.01
  %v515 = vmax.f32 %v477, %v507
  %v516 = vmax.f32 %v481, %v508
  %v517 = vmax.f32 %v485, %v509
  %v518 = vmax.f32 %v489, %v510
  %v519 = vmax.f32 %v493, %v511
  %v520 = vmax.f32 %v497, %v512
  %v521 = vmax.f32 %v501, %v513
  %v522 = vmax.f32 %v505, %v514
  %v523 = vld [vmem:[%s3] sm:$0xff]
  %v524 = vld [vmem:[%s3 + $0x8] sm:$0xff]
  %v525 = vld [vmem:[%s4] sm:$0xff]
  %v526 = vld [vmem:[%s4 + $0x8] sm:$0xff]
  %528 = vset.pattern.permute.xlu0 0
  %529 = vperm.xlu0 %528, %v525
  %v530 = vpop.permute.xlu0 %529
  %533 = vset.pattern.permute.xlu0 0
  %534 = vperm.xlu0 %533, %v526
  %v535 = vpop.permute.xlu0 %534
  %vm537 = vcmask 523264
  %v539 = vsel %vm537, %v523, 0
  %v542 = vsel %vm537, %v524, 0
  %544 = vmatpush.msra.mxu0 0.0
  %545 = vmatpush.msra.mxu0 0.0
  %546 = vmatpush.msra.mxu0 0.0
  %547 = vmatpush.msra.mxu0 0.0
  %548 = vmatpush.msra.mxu0 0.0
  %549 = vmatpush.msra.mxu0 0.0
  %550 = vmatpush.msra.mxu0 0.0
  %551 = vmatpush.msra.mxu0 0.0
  %v552 = vand.u32 %v522, 4294901760
  %553 = vmatpush.msra.mxu0 %v552
  %v554 = vand.u32 %v521, 4294901760
  %555 = vmatpush.msra.mxu0 %v554
  %v556 = vand.u32 %v520, 4294901760
  %557 = vmatpush.msra.mxu0 %v556
  %v558 = vand.u32 %v519, 4294901760
  %559 = vmatpush.msra.mxu0 %v558
  %v560 = vand.u32 %v518, 4294901760
  %561 = vmatpush.msra.mxu0 %v560
  %v562 = vand.u32 %v517, 4294901760
  %563 = vmatpush.msra.mxu0 %v562
  %v564 = vand.u32 %v516, 4294901760
  %565 = vmatpush.msra.mxu0 %v564
  %v566 = vand.u32 %v515, 4294901760
  %567 = vmatpush.msra.mxu0 %v566
  %v568 = vand.u32 %v539, 4294901760
  %v569 = vsub.f32 %v539, %v568
  %v570 = vand.u32 %v569, 4294901760
  %v571 = vsub.f32 %v569, %v570
  %v572 = vand.u32 %v571, 4294901760
  %573 = vmatmul.f32.gmra.mxu0 %v572
  %v574 = vpop.f32.mrf.mxu0
  %v575 = vadd.f32 %v530, %v574
  %v576 = vand.u32 %v542, 4294901760
  %v577 = vsub.f32 %v542, %v576
  %v578 = vand.u32 %v577, 4294901760
  %v579 = vsub.f32 %v577, %v578
  %v580 = vand.u32 %v579, 4294901760
  %581 = vmatmul.f32.gmra.mxu0 %v580
  %v582 = vpop.f32.mrf.mxu0
  %v583 = vadd.f32 %v535, %v582
  %584 = vdwg.mxu0
  %585 = vmatpush.msra.mxu0 0.0
  %586 = vmatpush.msra.mxu0 0.0
  %587 = vmatpush.msra.mxu0 0.0
  %588 = vmatpush.msra.mxu0 0.0
  %589 = vmatpush.msra.mxu0 0.0
  %590 = vmatpush.msra.mxu0 0.0
  %591 = vmatpush.msra.mxu0 0.0
  %592 = vmatpush.msra.mxu0 0.0
  %v593 = vand.u32 %v522, 4294901760
  %v594 = vsub.f32 %v522, %v593
  %v595 = vand.u32 %v594, 4294901760
  %v596 = vsub.f32 %v594, %v595
  %v597 = vand.u32 %v596, 4294901760
  %598 = vmatpush.msra.mxu0 %v597
  %v599 = vand.u32 %v521, 4294901760
  %v600 = vsub.f32 %v521, %v599
  %v601 = vand.u32 %v600, 4294901760
  %v602 = vsub.f32 %v600, %v601
  %v603 = vand.u32 %v602, 4294901760
  %604 = vmatpush.msra.mxu0 %v603
  %v605 = vand.u32 %v520, 4294901760
  %v606 = vsub.f32 %v520, %v605
  %v607 = vand.u32 %v606, 4294901760
  %v608 = vsub.f32 %v606, %v607
  %v609 = vand.u32 %v608, 4294901760
  %610 = vmatpush.msra.mxu0 %v609
  %v611 = vand.u32 %v519, 4294901760
  %v612 = vsub.f32 %v519, %v611
  %v613 = vand.u32 %v612, 4294901760
  %v614 = vsub.f32 %v612, %v613
  %v615 = vand.u32 %v614, 4294901760
  %616 = vmatpush.msra.mxu0 %v615
  %v617 = vand.u32 %v518, 4294901760
  %v618 = vsub.f32 %v518, %v617
  %v619 = vand.u32 %v618, 4294901760
  %v620 = vsub.f32 %v618, %v619
  %v621 = vand.u32 %v620, 4294901760
  %622 = vmatpush.msra.mxu0 %v621
  %v623 = vand.u32 %v517, 4294901760
  %v624 = vsub.f32 %v517, %v623
  %v625 = vand.u32 %v624, 4294901760
  %v626 = vsub.f32 %v624, %v625
  %v627 = vand.u32 %v626, 4294901760
  %628 = vmatpush.msra.mxu0 %v627
  %v629 = vand.u32 %v516, 4294901760
  %v630 = vsub.f32 %v516, %v629
  %v631 = vand.u32 %v630, 4294901760
  %v632 = vsub.f32 %v630, %v631
  %v633 = vand.u32 %v632, 4294901760
  %634 = vmatpush.msra.mxu0 %v633
  %v635 = vand.u32 %v515, 4294901760
  %v636 = vsub.f32 %v515, %v635
  %v637 = vand.u32 %v636, 4294901760
  %v638 = vsub.f32 %v636, %v637
  %v639 = vand.u32 %v638, 4294901760
  %640 = vmatpush.msra.mxu0 %v639
  %v641 = vand.u32 %v539, 4294901760
  %642 = vmatmul.f32.gmra.mxu0 %v641
  %v643 = vpop.f32.mrf.mxu0
  %v644 = vadd.f32 %v575, %v643
  %v645 = vand.u32 %v542, 4294901760
  %646 = vmatmul.f32.gmra.mxu0 %v645
  %v647 = vpop.f32.mrf.mxu0
  %v648 = vadd.f32 %v583, %v647
  %649 = vdwg.mxu0
  %650 = vmatpush.msra.mxu0 0.0
  %651 = vmatpush.msra.mxu0 0.0
  %652 = vmatpush.msra.mxu0 0.0
  %653 = vmatpush.msra.mxu0 0.0
  %654 = vmatpush.msra.mxu0 0.0
  %655 = vmatpush.msra.mxu0 0.0
  %656 = vmatpush.msra.mxu0 0.0
  %657 = vmatpush.msra.mxu0 0.0
  %v658 = vand.u32 %v522, 4294901760
  %v659 = vsub.f32 %v522, %v658
  %660 = vmatpush.msra.mxu0 %v659
  %v661 = vand.u32 %v521, 4294901760
  %v662 = vsub.f32 %v521, %v661
  %663 = vmatpush.msra.mxu0 %v662
  %v664 = vand.u32 %v520, 4294901760
  %v665 = vsub.f32 %v520, %v664
  %666 = vmatpush.msra.mxu0 %v665
  %v667 = vand.u32 %v519, 4294901760
  %v668 = vsub.f32 %v519, %v667
  %669 = vmatpush.msra.mxu0 %v668
  %v670 = vand.u32 %v518, 4294901760
  %v671 = vsub.f32 %v518, %v670
  %672 = vmatpush.msra.mxu0 %v671
  %v673 = vand.u32 %v517, 4294901760
  %v674 = vsub.f32 %v517, %v673
  %675 = vmatpush.msra.mxu0 %v674
  %v676 = vand.u32 %v516, 4294901760
  %v677 = vsub.f32 %v516, %v676
  %678 = vmatpush.msra.mxu0 %v677
  %v679 = vand.u32 %v515, 4294901760
  %v680 = vsub.f32 %v515, %v679
  %681 = vmatpush.msra.mxu0 %v680
  %v682 = vand.u32 %v539, 4294901760
  %v683 = vsub.f32 %v539, %v682
  %684 = vmatmul.f32.gmra.mxu0 %v683
  %v685 = vpop.f32.mrf.mxu0
  %v686 = vadd.f32 %v644, %v685
  %v687 = vand.u32 %v542, 4294901760
  %v688 = vsub.f32 %v542, %v687
  %689 = vmatmul.f32.gmra.mxu0 %v688
  %v690 = vpop.f32.mrf.mxu0
  %v691 = vadd.f32 %v648, %v690
  %692 = vdwg.mxu0
  %693 = vmatpush.msra.mxu0 0.0
  %694 = vmatpush.msra.mxu0 0.0
  %695 = vmatpush.msra.mxu0 0.0
  %696 = vmatpush.msra.mxu0 0.0
  %697 = vmatpush.msra.mxu0 0.0
  %698 = vmatpush.msra.mxu0 0.0
  %699 = vmatpush.msra.mxu0 0.0
  %700 = vmatpush.msra.mxu0 0.0
  %v701 = vand.u32 %v522, 4294901760
  %702 = vmatpush.msra.mxu0 %v701
  %v703 = vand.u32 %v521, 4294901760
  %704 = vmatpush.msra.mxu0 %v703
  %v705 = vand.u32 %v520, 4294901760
  %706 = vmatpush.msra.mxu0 %v705
  %v707 = vand.u32 %v519, 4294901760
  %708 = vmatpush.msra.mxu0 %v707
  %v709 = vand.u32 %v518, 4294901760
  %710 = vmatpush.msra.mxu0 %v709
  %v711 = vand.u32 %v517, 4294901760
  %712 = vmatpush.msra.mxu0 %v711
  %v713 = vand.u32 %v516, 4294901760
  %714 = vmatpush.msra.mxu0 %v713
  %v715 = vand.u32 %v515, 4294901760
  %716 = vmatpush.msra.mxu0 %v715
  %v717 = vand.u32 %v539, 4294901760
  %v718 = vsub.f32 %v539, %v717
  %v719 = vand.u32 %v718, 4294901760
  %720 = vmatmul.f32.gmra.mxu0 %v719
  %v721 = vpop.f32.mrf.mxu0
  %v722 = vadd.f32 %v686, %v721
  %v723 = vand.u32 %v542, 4294901760
  %v724 = vsub.f32 %v542, %v723
  %v725 = vand.u32 %v724, 4294901760
  %726 = vmatmul.f32.gmra.mxu0 %v725
  %v727 = vpop.f32.mrf.mxu0
  %v728 = vadd.f32 %v691, %v727
  %729 = vdwg.mxu0
  %730 = vmatpush.msra.mxu0 0.0
  %731 = vmatpush.msra.mxu0 0.0
  %732 = vmatpush.msra.mxu0 0.0
  %733 = vmatpush.msra.mxu0 0.0
  %734 = vmatpush.msra.mxu0 0.0
  %735 = vmatpush.msra.mxu0 0.0
  %736 = vmatpush.msra.mxu0 0.0
  %737 = vmatpush.msra.mxu0 0.0
  %v738 = vand.u32 %v522, 4294901760
  %v739 = vsub.f32 %v522, %v738
  %v740 = vand.u32 %v739, 4294901760
  %741 = vmatpush.msra.mxu0 %v740
  %v742 = vand.u32 %v521, 4294901760
  %v743 = vsub.f32 %v521, %v742
  %v744 = vand.u32 %v743, 4294901760
  %745 = vmatpush.msra.mxu0 %v744
  %v746 = vand.u32 %v520, 4294901760
  %v747 = vsub.f32 %v520, %v746
  %v748 = vand.u32 %v747, 4294901760
  %749 = vmatpush.msra.mxu0 %v748
  %v750 = vand.u32 %v519, 4294901760
  %v751 = vsub.f32 %v519, %v750
  %v752 = vand.u32 %v751, 4294901760
  %753 = vmatpush.msra.mxu0 %v752
  %v754 = vand.u32 %v518, 4294901760
  %v755 = vsub.f32 %v518, %v754
  %v756 = vand.u32 %v755, 4294901760
  %757 = vmatpush.msra.mxu0 %v756
  %v758 = vand.u32 %v517, 4294901760
  %v759 = vsub.f32 %v517, %v758
  %v760 = vand.u32 %v759, 4294901760
  %761 = vmatpush.msra.mxu0 %v760
  %v762 = vand.u32 %v516, 4294901760
  %v763 = vsub.f32 %v516, %v762
  %v764 = vand.u32 %v763, 4294901760
  %765 = vmatpush.msra.mxu0 %v764
  %v766 = vand.u32 %v515, 4294901760
  %v767 = vsub.f32 %v515, %v766
  %v768 = vand.u32 %v767, 4294901760
  %769 = vmatpush.msra.mxu0 %v768
  %v770 = vand.u32 %v539, 4294901760
  %771 = vmatmul.f32.gmra.mxu0 %v770
  %v772 = vpop.f32.mrf.mxu0
  %v773 = vadd.f32 %v722, %v772
  %v774 = vand.u32 %v542, 4294901760
  %775 = vmatmul.f32.gmra.mxu0 %v774
  %v776 = vpop.f32.mrf.mxu0
  %v777 = vadd.f32 %v728, %v776
  %778 = vdwg.mxu0
  %779 = vmatpush.msra.mxu0 0.0
  %780 = vmatpush.msra.mxu0 0.0
  %781 = vmatpush.msra.mxu0 0.0
  %782 = vmatpush.msra.mxu0 0.0
  %783 = vmatpush.msra.mxu0 0.0
  %784 = vmatpush.msra.mxu0 0.0
  %785 = vmatpush.msra.mxu0 0.0
  %786 = vmatpush.msra.mxu0 0.0
  %v787 = vand.u32 %v522, 4294901760
  %788 = vmatpush.msra.mxu0 %v787
  %v789 = vand.u32 %v521, 4294901760
  %790 = vmatpush.msra.mxu0 %v789
  %v791 = vand.u32 %v520, 4294901760
  %792 = vmatpush.msra.mxu0 %v791
  %v793 = vand.u32 %v519, 4294901760
  %794 = vmatpush.msra.mxu0 %v793
  %v795 = vand.u32 %v518, 4294901760
  %796 = vmatpush.msra.mxu0 %v795
  %v797 = vand.u32 %v517, 4294901760
  %798 = vmatpush.msra.mxu0 %v797
  %v799 = vand.u32 %v516, 4294901760
  %800 = vmatpush.msra.mxu0 %v799
  %v801 = vand.u32 %v515, 4294901760
  %802 = vmatpush.msra.mxu0 %v801
  %v803 = vand.u32 %v539, 4294901760
  %804 = vmatmul.f32.gmra.mxu0 %v803
  %v805 = vpop.f32.mrf.mxu0
  %v806 = vadd.f32 %v773, %v805
  %v807 = vand.u32 %v542, 4294901760
  %808 = vmatmul.f32.gmra.mxu0 %v807
  %v809 = vpop.f32.mrf.mxu0
  %v810 = vadd.f32 %v777, %v809
  %811 = vdwg.mxu0
  %vm812 = vcmask 64512
  %813 = vst.msk [vmem:[%s5] sm:$0xff] %vm812, %v806
  %814 = vst.msk [vmem:[%s5 + $0x8] sm:$0xff] %vm812, %v810
  // Predicated region
  $region22: #{tpu_custom_call.1} parent=0 // pred_check
    _
  $region23: #{tpu_custom_call.1} parent=0 // pred_check_branch
    %816 = sbr.rel (0) target = $region25
  $region24: #{tpu_custom_call.1} parent=0 // pred_region
    _
  $region25: #{tpu_custom_call.1} parent=0 // pred_fallthru
    _
  // Predicated region
  $region26: #{tpu_custom_call.1} parent=0 // pred_check
    _
  $region27: #{tpu_custom_call.1} parent=0 // pred_check_branch
    %818 = sbr.rel (0) target = $region29
  $region28: #{tpu_custom_call.1} parent=0 // pred_region
    _
  $region29: #{tpu_custom_call.1} parent=0 // pred_fallthru
    _

</llo_original>
